<compile_context>
chip_gen: v6e
topology: v6e:2x2x1
jax: 0.10.0
libtpu: 0.0.40
codegen_flags: <defaults>
</compile_context>

<pallas_src>
import functools

import jax
import jax.numpy as jnp
from jax import lax
from jax.experimental import pallas as pl
from jax.experimental.pallas import tpu as pltpu


def _normal_loss_kernel(p_ref, t_ref, o_ref, *, matmul_dtype):
    """p_ref: (3, TN) pred tile (points on lanes).
       t_ref: (TK, 3) true tile (points on sublanes).
       o_ref: (8, TN) running column-max of |cos| (all 8 rows identical)."""
    eps2 = 1e-24  # eps**2 with eps = 1e-12 (torch F.normalize default clamp)

    k = pl.program_id(1)

    @pl.when(k == 0)
    def _init():
        # |cos| >= 0 and zero-padded rows/cols produce exactly 0, so a zero
        # init is a valid identity for the running max (cheaper than +/-inf).
        o_ref[...] = jnp.zeros(o_ref.shape, dtype=o_ref.dtype)

    # --- Normalize pred tile (3, TN): sum of squares over 3 sublanes via
    #     explicit slices (VPU only), rsqrt on the EUP slot. -------------------
    p = p_ref[...].astype(jnp.float32)
    p_sumsq = (p[0:1, :] * p[0:1, :]
               + p[1:2, :] * p[1:2, :]
               + p[2:3, :] * p[2:3, :])                      # (1, TN)
    p_n = p * lax.rsqrt(jnp.maximum(p_sumsq, eps2))          # (3, TN)

    # --- Normalize true tile (TK, 3): sum of squares over 3 lanes via slices. -
    t = t_ref[...].astype(jnp.float32)
    t_sumsq = (t[:, 0:1] * t[:, 0:1]
               + t[:, 1:2] * t[:, 1:2]
               + t[:, 2:3] * t[:, 2:3])                      # (TK, 1)
    t_n = t * lax.rsqrt(jnp.maximum(t_sumsq, eps2))          # (TK, 3)

    # --- cos = normals_true @ normals_pred.T -> (TK, TN). Canonical K=3
    #     contraction (no in-kernel transpose); bf16 operands feed the MXU,
    #     accumulation stays f32. ----------------------------------------------
    cos = lax.dot_general(
        t_n.astype(matmul_dtype), p_n.astype(matmul_dtype),
        dimension_numbers=(((1,), (0,)), ((), ())),
        preferred_element_type=jnp.float32)

    # Hot loop: |cos| + column max + running max (the `1 -` is hoisted to the
    # wrapper via min(1 - x) == 1 - max(x)).
    col_max = jnp.max(jnp.abs(cos), axis=0, keepdims=True)   # (1, TN)
    o_ref[...] = jnp.maximum(o_ref[...], col_max)


def _round_up(x, m):
    return ((x + m - 1) // m) * m


@functools.partial(jax.jit, static_argnames=("tn", "tk", "matmul_dtype"))
def normal_loss(y_pred, y_true, *, tn=2048, tk=512, matmul_dtype=jnp.bfloat16):
    """Pallas TPU implementation of NormalLoss.forward.

    y_pred: (Np, C), y_true: (Nt, C) with C >= 3. Returns scalar float32 loss.
    Defaults (tn=2048, tk=512) keep the (TK, TN) f32 score tile at 4 MiB, which
    fits the default scoped-VMEM limit on v5e/v6e/v7x; on v5e consider
    matmul_dtype=jnp.float32 and tn=1024.
    """
    n_pred = y_pred.shape[0]
    n_true = y_true.shape[0]

    # Channel slice + layout plumbing in the wrapper (pure data movement): only
    # the 3 normal channels are streamed, and pred is presented pre-transposed
    # as (3, Np) so the kernel's dot is a clean lane-dense MXU tile.
    p = jnp.transpose(y_pred[:, 0:3].astype(jnp.float32))    # (3, Np)
    t = y_true[:, 0:3].astype(jnp.float32)                   # (Nt, 3)

    # Tile sizes clamped to the (padded) problem and (8, 128)-aligned.
    tn = _round_up(min(tn, _round_up(n_pred, 128)), 128)
    tk = _round_up(min(tk, _round_up(n_true, 8)), 8)
    np_pad = _round_up(n_pred, tn)
    nt_pad = _round_up(n_true, tk)

    # Zero padding is safe: padded true rows normalize to 0 -> |cos| = 0 which
    # never beats a real row in the max; padded pred columns are excluded from
    # the mean by the [:n_pred] slice below.
    p = jnp.pad(p, ((0, 0), (0, np_pad - n_pred)))
    t = jnp.pad(t, ((0, nt_pad - n_true), (0, 0)))

    grid = (np_pad // tn, nt_pad // tk)

    maxes = pl.pallas_call(
        functools.partial(_normal_loss_kernel, matmul_dtype=matmul_dtype),
        out_shape=jax.ShapeDtypeStruct((8, np_pad), jnp.float32),
        grid=grid,
        in_specs=[
            pl.BlockSpec((3, tn), lambda i, k: (0, i)),   # pred: fixed over k
            pl.BlockSpec((tk, 3), lambda i, k: (k, 0)),   # true: streams over k
        ],
        out_specs=pl.BlockSpec((8, tn), lambda i, k: (0, i)),  # resident acc
        compiler_params=pltpu.CompilerParams(
            dimension_semantics=("parallel", "arbitrary")),
    )(p, t)

    # All 8 sublanes hold the same running column-max; finish
    # mean(1 - max|cos|) over the true (unpadded) pred points in the wrapper
    # (O(Np) work; min(1 - x) == 1 - max(x)).
    col_max = maxes[0, :n_pred]
    return jnp.mean(1.0 - col_max)


def _normal_loss_ref(y_pred, y_true):
    """Pure-JAX (f32-exact) reference for correctness checking."""
    eps = 1e-12
    p = y_pred[:, 0:3].astype(jnp.float32)
    t = y_true[:, 0:3].astype(jnp.float32)
    p = p / jnp.maximum(jnp.linalg.norm(p, axis=1, keepdims=True), eps)
    t = t / jnp.maximum(jnp.linalg.norm(t, axis=1, keepdims=True), eps)
    cos = 1.0 - jnp.abs(t @ p.T)
    return jnp.mean(jnp.min(cos, axis=0))


if __name__ == "__main__":
    key = jax.random.PRNGKey(0)
    k1, k2, k3, k4 = jax.random.split(key, 4)

    # Case 1: small point clouds with extra channels (C > 3), default tiles.
    y_pred = jax.random.normal(k1, (64, 6), dtype=jnp.float32)
    y_true = jax.random.normal(k2, (48, 6), dtype=jnp.float32)
    loss = jax.block_until_ready(normal_loss(y_pred, y_true))
    ref = jax.block_until_ready(_normal_loss_ref(y_pred, y_true))
    # bf16 MXU operands perturb each cos by O(1e-3); loss-level error << 5e-3.
    assert jnp.allclose(loss, ref, atol=5e-3, rtol=5e-2), (loss, ref)

    # Case 2: sizes exercising a multi-tile grid + remainder padding on both axes.
    y_pred2 = jax.random.normal(k3, (200, 3), dtype=jnp.float32)
    y_true2 = jax.random.normal(k4, (150, 3), dtype=jnp.float32)
    loss2 = jax.block_until_ready(normal_loss(y_pred2, y_true2, tn=128, tk=64))
    ref2 = jax.block_until_ready(_normal_loss_ref(y_pred2, y_true2))
    assert jnp.allclose(loss2, ref2, atol=5e-3, rtol=5e-2), (loss2, ref2)

    print("KERNEL_OK")
</pallas_src>

<mosaic_0001>
module attributes {stable_mosaic.version = 11 : i64} {
  func.func @_normal_loss_kernel(%arg0: i32, %arg1: i32, %arg2: memref<3x128xf32, #tpu.memory_space<vmem>>, %arg3: memref<48x3xf32, #tpu.memory_space<vmem>>, %arg4: memref<8x128xf32, #tpu.memory_space<vmem>>) attributes {dimension_semantics = [#tpu.dimension_semantics<parallel>, #tpu.dimension_semantics<arbitrary>], iteration_bounds = array<i64: 1, 1>, scalar_prefetch = 0 : i64, scratch_operands = 0 : i64, tpu.core_type = #tpu.core_type<tc>, window_params = [{transform_indices = @transform_0, window_bounds = array<i64: 3, 128>}, {transform_indices = @transform_1, window_bounds = array<i64: 48, 3>}, {transform_indices = @transform_2, window_bounds = array<i64: 8, 128>}]} {
    %c0_i32 = arith.constant 0 : i32
    %0 = arith.cmpi eq, %arg1, %c0_i32 : i32
    %1 = arith.extui %0 : i1 to i32
    %c0_i32_0 = arith.constant 0 : i32
    %2 = arith.cmpi ne, %1, %c0_i32_0 : i32
    scf.if %2 {
      %cst_11 = arith.constant 0.000000e+00 : f32
      %47 = vector.broadcast %cst_11 : f32 to vector<8x128xf32>
      %c0_12 = arith.constant 0 : index
      %c0_13 = arith.constant 0 : index
      %48 = vector.load %arg4[%c0_12, %c0_13] : memref<8x128xf32, #tpu.memory_space<vmem>>, vector<8x128xf32>
      tpu.vector_store %arg4[%c0_12, %c0_13], %47 {strides = array<i32>} : memref<8x128xf32, #tpu.memory_space<vmem>>, vector<8x128xf32>,
    } else {
    }
    %c0 = arith.constant 0 : index
    %c0_1 = arith.constant 0 : index
    %3 = vector.load %arg2[%c0, %c0_1] : memref<3x128xf32, #tpu.memory_space<vmem>>, vector<3x128xf32>
    %4 = vector.extract_strided_slice %3 {offsets = [0, 0], sizes = [1, 128], strides = [1, 1]} : vector<3x128xf32> to vector<1x128xf32>
    %5 = vector.extract_strided_slice %3 {offsets = [0, 0], sizes = [1, 128], strides = [1, 1]} : vector<3x128xf32> to vector<1x128xf32>
    %6 = arith.mulf %4, %5 : vector<1x128xf32>
    %7 = vector.extract_strided_slice %3 {offsets = [1, 0], sizes = [1, 128], strides = [1, 1]} : vector<3x128xf32> to vector<1x128xf32>
    %8 = vector.extract_strided_slice %3 {offsets = [1, 0], sizes = [1, 128], strides = [1, 1]} : vector<3x128xf32> to vector<1x128xf32>
    %9 = arith.mulf %7, %8 : vector<1x128xf32>
    %10 = arith.addf %6, %9 : vector<1x128xf32>
    %11 = vector.extract_strided_slice %3 {offsets = [2, 0], sizes = [1, 128], strides = [1, 1]} : vector<3x128xf32> to vector<1x128xf32>
    %12 = vector.extract_strided_slice %3 {offsets = [2, 0], sizes = [1, 128], strides = [1, 1]} : vector<3x128xf32> to vector<1x128xf32>
    %13 = arith.mulf %11, %12 : vector<1x128xf32>
    %14 = arith.addf %10, %13 : vector<1x128xf32>
    %cst = arith.constant 1.000000e-24 : f32
    %15 = vector.broadcast %cst : f32 to vector<1x128xf32>
    %16 = arith.maximumf %14, %15 : vector<1x128xf32>
    %17 = math.rsqrt %16 : vector<1x128xf32>
    %18 = vector.broadcast %17 : vector<1x128xf32> to vector<3x128xf32>
    %19 = arith.mulf %3, %18 : vector<3x128xf32>
    %c0_2 = arith.constant 0 : index
    %c0_3 = arith.constant 0 : index
    %20 = vector.load %arg3[%c0_2, %c0_3] : memref<48x3xf32, #tpu.memory_space<vmem>>, vector<48x3xf32>
    %21 = vector.extract_strided_slice %20 {offsets = [0, 0], sizes = [48, 1], strides = [1, 1]} : vector<48x3xf32> to vector<48x1xf32>
    %22 = vector.extract_strided_slice %20 {offsets = [0, 0], sizes = [48, 1], strides = [1, 1]} : vector<48x3xf32> to vector<48x1xf32>
    %23 = arith.mulf %21, %22 : vector<48x1xf32>
    %24 = vector.extract_strided_slice %20 {offsets = [0, 1], sizes = [48, 1], strides = [1, 1]} : vector<48x3xf32> to vector<48x1xf32>
    %25 = vector.extract_strided_slice %20 {offsets = [0, 1], sizes = [48, 1], strides = [1, 1]} : vector<48x3xf32> to vector<48x1xf32>
    %26 = arith.mulf %24, %25 : vector<48x1xf32>
    %27 = arith.addf %23, %26 : vector<48x1xf32>
    %28 = vector.extract_strided_slice %20 {offsets = [0, 2], sizes = [48, 1], strides = [1, 1]} : vector<48x3xf32> to vector<48x1xf32>
    %29 = vector.extract_strided_slice %20 {offsets = [0, 2], sizes = [48, 1], strides = [1, 1]} : vector<48x3xf32> to vector<48x1xf32>
    %30 = arith.mulf %28, %29 : vector<48x1xf32>
    %31 = arith.addf %27, %30 : vector<48x1xf32>
    %cst_4 = arith.constant 1.000000e-24 : f32
    %32 = vector.broadcast %cst_4 : f32 to vector<48x1xf32>
    %33 = arith.maximumf %31, %32 : vector<48x1xf32>
    %34 = math.rsqrt %33 : vector<48x1xf32>
    %35 = vector.broadcast %34 : vector<48x1xf32> to vector<48x3xf32>
    %36 = arith.mulf %20, %35 : vector<48x3xf32>
    %37 = arith.truncf %36 : vector<48x3xf32> to vector<48x3xbf16>
    %38 = arith.truncf %19 : vector<3x128xf32> to vector<3x128xbf16>
    %cst_5 = arith.constant dense<0.000000e+00> : vector<48x128xf32>
    %39 = tpu.matmul %37, %38, %cst_5 {dimension_numbers = #tpu.dot_dimension_numbers<[1], [0], [0], [1], [0, 0, 1, 1], [], []>} : vector<48x3xbf16>, vector<3x128xbf16>, vector<48x128xf32> -> vector<48x128xf32>
    %40 = math.absf %39 : vector<48x128xf32>
    %cst_6 = arith.constant dense<0xFF800000> : vector<128xf32>
    %41 = vector.multi_reduction <maximumf>, %40, %cst_6 [0] : vector<48x128xf32> to vector<128xf32>
    %42 = vector.shape_cast %41 : vector<128xf32> to vector<1x128xf32>
    %c0_7 = arith.constant 0 : index
    %c0_8 = arith.constant 0 : index
    %43 = vector.load %arg4[%c0_7, %c0_8] : memref<8x128xf32, #tpu.memory_space<vmem>>, vector<8x128xf32>
    %44 = vector.broadcast %42 : vector<1x128xf32> to vector<8x128xf32>
    %45 = arith.maximumf %43, %44 : vector<8x128xf32>
    %c0_9 = arith.constant 0 : index
    %c0_10 = arith.constant 0 : index
    %46 = vector.load %arg4[%c0_9, %c0_10] : memref<8x128xf32, #tpu.memory_space<vmem>>, vector<8x128xf32>
    tpu.vector_store %arg4[%c0_9, %c0_10], %45 {strides = array<i32>} : memref<8x128xf32, #tpu.memory_space<vmem>>, vector<8x128xf32>,
    return
  }
  func.func @transform_0(%arg0: i32, %arg1: i32) -> (i32, i32) {
    %c0_i32 = arith.constant 0 : i32
    %c0_i32_0 = arith.constant 0 : i32
    return %c0_i32, %arg0 : i32, i32
  }
  func.func @transform_1(%arg0: i32, %arg1: i32) -> (i32, i32) {
    %c0_i32 = arith.constant 0 : i32
    %c0_i32_0 = arith.constant 0 : i32
    return %arg1, %c0_i32 : i32, i32
  }
  func.func @transform_2(%arg0: i32, %arg1: i32) -> (i32, i32) {
    %c0_i32 = arith.constant 0 : i32
    %c0_i32_0 = arith.constant 0 : i32
    return %c0_i32, %arg0 : i32, i32
  }
}

</mosaic_0001>

<llo_original>
// kernel: normal_loss.1
$region0: #{normal_loss.1}
  #allocation0 [shape = 'u32[]', space=smem, size = 0x4, offset = 0x4, fixed_abs, tag = 'smem constant byte address 0x4 - core index']
  #allocation1 [shape = 'u32[144,128]{1,0:T(1,128)}', space=vmem, size = 0x12000, scoped, tag = 'internal scratch']
  %s0 = inlined_call_operand.vmem [shape: f32[3,128], index: 0, kind: input, shape index: {}]
  %s1 = inlined_call_operand.vmem [shape: f32[48,3], index: 1, kind: input, shape index: {}]
  %s2 = inlined_call_operand.vmem [shape: f32[8,128], index: 2, kind: output, shape index: {}]
  %s3 = sld [smem:[#allocation0]]
  $region22: #{normal_loss.1} parent=0
    _
  %s5 = ssub.s32 1, %s3
  %s6 = scalar_select 0, %s5, %s3
  // Predicated region
  $region2: #{normal_loss.1} parent=0 // pred_check
    _
  $region3: #{normal_loss.1} parent=0 // pred_check_branch
    %8 = sbr.rel (0) target = $region5
  $region4: #{normal_loss.1} parent=0 // pred_region
    _
  $region5: #{normal_loss.1} parent=0 // pred_fallthru
    _
  // Predicated region
  $region6: #{normal_loss.1} parent=0 // pred_check
    _
  $region7: #{normal_loss.1} parent=0 // pred_check_branch
    %10 = sbr.rel (0) target = $region9
  $region8: #{normal_loss.1} parent=0 // pred_region
    _
  $region9: #{normal_loss.1} parent=0 // pred_fallthru
    _
  %p12 = scmp.eq.s32.totalorder 0, 0
  // Predicated region
  $region10: #{normal_loss.1} parent=0 // pred_check
    %p13 = pneg %p12
  $region11: #{normal_loss.1} parent=0 // pred_check_branch
    %15 = sbr.rel (%p13) target = $region13
  $region12: #{normal_loss.1} parent=0 // pred_region
    %16 = vst [vmem:[%s2] sm:$0xff] 0.0
  $region13: #{normal_loss.1} parent=0 // pred_fallthru
    _
  %v17 = vld [vmem:[%s0] sm:$0x7]
  %v18 = vmul.f32 %v17, %v17
  %v20 = vrot.slane %v18, 1
  %v22 = vadd.f32 %v18, %v20
  %v23 = vrot.slane %v18, 2
  %v25 = vadd.f32 %v22, %v23
  %v26 = vmax.f32 %v25, 1e-24
  %v27 = vrsqrt.pop %v26
  %v28 = vlaneseq
  %v29 = vshrl.u32 %v28, 7
  %v30 = vsub.s32 0, %v29
  %v31 = vrot.slane %v27, %v30
  %v32 = vmul.f32 %v17, %v31
  %v33 = vld [vmem:[%s1] sm:$0xff]
  %v34 = vld [vmem:[%s1 + $0x8] sm:$0xff]
  %v35 = vld [vmem:[%s1 + $0x10] sm:$0xff]
  %v36 = vld [vmem:[%s1 + $0x18] sm:$0xff]
  %v37 = vld [vmem:[%s1 + $0x20] sm:$0xff]
  %v38 = vld [vmem:[%s1 + $0x28] sm:$0xff]
  %v39 = vmul.f32 %v33, %v33
  %v40 = vmul.f32 %v34, %v34
  %v41 = vmul.f32 %v35, %v35
  %v42 = vmul.f32 %v36, %v36
  %v43 = vmul.f32 %v37, %v37
  %v44 = vmul.f32 %v38, %v38
  %51 = vrot.lane.b32.xlu0 %v39, 127
  %v52 = vpop.permute.xlu0 %51
  %53 = vrot.lane.b32.xlu0 %v40, 127
  %v54 = vpop.permute.xlu0 %53
  %55 = vrot.lane.b32.xlu0 %v41, 127
  %v56 = vpop.permute.xlu0 %55
  %57 = vrot.lane.b32.xlu0 %v42, 127
  %v58 = vpop.permute.xlu0 %57
  %59 = vrot.lane.b32.xlu0 %v43, 127
  %v60 = vpop.permute.xlu0 %59
  %61 = vrot.lane.b32.xlu0 %v44, 127
  %v62 = vpop.permute.xlu0 %61
  %v69 = vadd.f32 %v39, %v52
  %v70 = vadd.f32 %v40, %v54
  %v71 = vadd.f32 %v41, %v56
  %v72 = vadd.f32 %v42, %v58
  %v73 = vadd.f32 %v43, %v60
  %v74 = vadd.f32 %v44, %v62
  %75 = vrot.lane.b32.xlu0 %v39, 126
  %v76 = vpop.permute.xlu0 %75
  %77 = vrot.lane.b32.xlu0 %v40, 126
  %v78 = vpop.permute.xlu0 %77
  %79 = vrot.lane.b32.xlu0 %v41, 126
  %v80 = vpop.permute.xlu0 %79
  %81 = vrot.lane.b32.xlu0 %v42, 126
  %v82 = vpop.permute.xlu0 %81
  %83 = vrot.lane.b32.xlu0 %v43, 126
  %v84 = vpop.permute.xlu0 %83
  %85 = vrot.lane.b32.xlu0 %v44, 126
  %v86 = vpop.permute.xlu0 %85
  %v93 = vadd.f32 %v69, %v76
  %v94 = vadd.f32 %v70, %v78
  %v95 = vadd.f32 %v71, %v80
  %v96 = vadd.f32 %v72, %v82
  %v97 = vadd.f32 %v73, %v84
  %v98 = vadd.f32 %v74, %v86
  %v99 = vmax.f32 %v93, 1e-24
  %v100 = vmax.f32 %v94, 1e-24
  %v101 = vmax.f32 %v95, 1e-24
  %v102 = vmax.f32 %v96, 1e-24
  %v103 = vmax.f32 %v97, 1e-24
  %v104 = vmax.f32 %v98, 1e-24
  %v105 = vrsqrt.pop %v99
  %v106 = vrsqrt.pop %v100
  %v107 = vrsqrt.pop %v101
  %v108 = vrsqrt.pop %v102
  %v109 = vrsqrt.pop %v103
  %v110 = vrsqrt.pop %v104
  %112 = vset.pattern.permute.xlu0 0
  %113 = vperm.xlu0 %112, %v105
  %v114 = vpop.permute.xlu0 %113
  %117 = vset.pattern.permute.xlu0 0
  %118 = vperm.xlu0 %117, %v106
  %v119 = vpop.permute.xlu0 %118
  %122 = vset.pattern.permute.xlu0 0
  %123 = vperm.xlu0 %122, %v107
  %v124 = vpop.permute.xlu0 %123
  %127 = vset.pattern.permute.xlu0 0
  %128 = vperm.xlu0 %127, %v108
  %v129 = vpop.permute.xlu0 %128
  %132 = vset.pattern.permute.xlu0 0
  %133 = vperm.xlu0 %132, %v109
  %v134 = vpop.permute.xlu0 %133
  %137 = vset.pattern.permute.xlu0 0
  %138 = vperm.xlu0 %137, %v110
  %v139 = vpop.permute.xlu0 %138
  %v141 = vmul.f32 %v33, %v114
  %v142 = vmul.f32 %v34, %v119
  %v143 = vmul.f32 %v35, %v124
  %v144 = vmul.f32 %v36, %v129
  %v145 = vmul.f32 %v37, %v134
  %v146 = vmul.f32 %v38, %v139
  %v147 = vpack.c.bf16 %v142, %v141
  %v148 = vpack.c.bf16 %v144, %v143
  %v149 = vpack.c.bf16 %v146, %v145
  %v150 = vpack.c.bf16 %v32, %v32
  %vm151 = vcmask 23552
  %v153 = vsel %vm151, %v147, 0
  %v156 = vsel %vm151, %v148, 0
  %v159 = vsel %vm151, %v149, 0
  %vm161 = vcmask 1040384
  %vm162 = vcmask 1041408
  %v163 = vsel %vm161, 4294967295, 65535
  %v164 = vsel %vm162, %v163, 0
  %v166 = vand.u32 %v150, %v164
  %168 = vmatprep.subr.bf16.mxu0 0
  %169 = vmatpush1.bf16.msra.mxu0 0
  %170 = vmatprep.subr.bf16.mxu0 0
  %171 = vmatpush1.bf16.msra.mxu0 0
  %172 = vmatprep.subr.bf16.mxu0 0
  %173 = vmatpush1.bf16.msra.mxu0 0
  %174 = vmatprep.subr.bf16.mxu0 0
  %175 = vmatpush1.bf16.msra.mxu0 0
  %176 = vmatprep.subr.bf16.mxu0 0
  %177 = vmatpush1.bf16.msra.mxu0 0
  %178 = vmatprep.subr.bf16.mxu0 0
  %179 = vmatpush1.bf16.msra.mxu0 0
  %180 = vmatprep.subr.bf16.mxu0 0
  %181 = vmatpush1.bf16.msra.mxu0 0
  %182 = vmatprep.subr.bf16.mxu0 0
  %183 = vmatpush1.bf16.msra.mxu0 %v166
  %184 = vmatprep.subr.bf16.mxu0 0
  %185 = vmatpush2.bf16.msra.mxu0 0
  %186 = vmatprep.subr.bf16.mxu0 0
  %187 = vmatpush2.bf16.msra.mxu0 0
  %188 = vmatprep.subr.bf16.mxu0 0
  %189 = vmatpush2.bf16.msra.mxu0 0
  %190 = vmatprep.subr.bf16.mxu0 0
  %191 = vmatpush2.bf16.msra.mxu0 0
  %192 = vmatprep.subr.bf16.mxu0 0
  %193 = vmatpush2.bf16.msra.mxu0 0
  %194 = vmatprep.subr.bf16.mxu0 0
  %195 = vmatpush2.bf16.msra.mxu0 0
  %196 = vmatprep.subr.bf16.mxu0 0
  %197 = vmatpush2.bf16.msra.mxu0 0
  %198 = vmatprep.subr.bf16.mxu0 0
  %199 = vmatpush2.bf16.msra.mxu0 0
  %200 = vmatprep.mubr.bf16.mxu0 0
  %201 = vmatmul.mubr.bf16.gmra.mxu0 %v153
  %v202 = vpop.f32.mrf.mxu0
  %v203 = vadd.f32 0.0, %v202
  %v204 = vpop.f32.mrf.mxu0
  %v205 = vpop.f32.mrf.mxu0
  %v206 = vadd.f32 0.0, %v205
  %v207 = vpop.f32.mrf.mxu0
  %208 = vmatprep.mubr.bf16.mxu0 0
  %209 = vmatmul.mubr.bf16.gmra.mxu0 %v156
  %v210 = vpop.f32.mrf.mxu0
  %v211 = vadd.f32 0.0, %v210
  %v212 = vpop.f32.mrf.mxu0
  %v213 = vpop.f32.mrf.mxu0
  %v214 = vadd.f32 0.0, %v213
  %v215 = vpop.f32.mrf.mxu0
  %216 = vmatprep.mubr.bf16.mxu0 0
  %217 = vmatmul.mubr.bf16.gmra.mxu0 %v159
  %v218 = vpop.f32.mrf.mxu0
  %v219 = vadd.f32 0.0, %v218
  %v220 = vpop.f32.mrf.mxu0
  %v221 = vpop.f32.mrf.mxu0
  %v222 = vadd.f32 0.0, %v221
  %v223 = vpop.f32.mrf.mxu0
  %224 = vdwg.mxu0
  %v225 = vand.u32 2147483647, %v203
  %v226 = vand.u32 2147483647, %v206
  %v227 = vand.u32 2147483647, %v211
  %v228 = vand.u32 2147483647, %v214
  %v229 = vand.u32 2147483647, %v219
  %v230 = vand.u32 2147483647, %v222
  %v231 = vmax.f32 %v225, %v229
  %v232 = vmax.f32 %v226, %v230
  %v233 = vmax.f32 %v231, %v232
  %v234 = vmax.f32 %v227, %v228
  %v235 = vmax.f32 %v233, %v234
  %v236 = vrot.slane %v235, 4
  %v237 = vmax.f32 %v235, %v236
  %v238 = vrot.slane %v237, 2
  %v239 = vmax.f32 %v237, %v238
  %v240 = vrot.slane %v239, 1
  %v241 = vmax.f32 %v239, %v240
  %v242 = vld [vmem:[%s2] sm:$0xff]
  %v243 = vmax.f32 %v242, %v241
  %244 = vst [vmem:[%s2] sm:$0xff] %v243
  // Predicated region
  $region14: #{normal_loss.1} parent=0 // pred_check
    _
  $region15: #{normal_loss.1} parent=0 // pred_check_branch
    %246 = sbr.rel (0) target = $region17
  $region16: #{normal_loss.1} parent=0 // pred_region
    _
  $region17: #{normal_loss.1} parent=0 // pred_fallthru
    _
  // Predicated region
  $region18: #{normal_loss.1} parent=0 // pred_check
    _
  $region19: #{normal_loss.1} parent=0 // pred_check_branch
    %248 = sbr.rel (0) target = $region21
  $region20: #{normal_loss.1} parent=0 // pred_region
    _
  $region21: #{normal_loss.1} parent=0 // pred_fallthru
    _

</llo_original>
